<compile_context>
chip_gen: v5e
topology: v5e:2x2
jax: 0.10.0
libtpu: 0.0.40
codegen_flags: <defaults>
</compile_context>

<pallas_src>
import math
import functools

import jax
import jax.numpy as jnp
from jax import lax
from jax.experimental import pallas as pl
from jax.experimental.pallas import tpu as pltpu


# --------------------------------------------------------------------------
# Per-generation configuration
# --------------------------------------------------------------------------
def _chip_config():
    """Returns (attn_tile_pref, row_tile_pref, vmem_limit_bytes)."""
    kind = ""
    try:
        kind = jax.devices()[0].device_kind.lower()
    except Exception:
        pass
    if "v7" in kind:
        # 64 MiB physical VMEM, 2x256x256 MXU: 256-wide tiles, tight VMEM budget.
        return 256, 256, 48 * 1024 * 1024
    if "v6" in kind:
        # 128 MiB VMEM, 2x256x256 MXU.
        return 256, 512, 96 * 1024 * 1024
    if "v5" in kind and ("lite" in kind or "v5e" in kind):
        # v5e: 4x128x128 MXU is already filled at 128-wide attention tiles.
        return 128, 256, 96 * 1024 * 1024
    # v5p / v4 / unknown: conservative.
    return 128, 256, 64 * 1024 * 1024


def _fit_tile(t, pref):
    """Largest 128-multiple tile <= pref that divides t, else full t."""
    for cand in (512, 384, 256, 128):
        if cand <= pref and t % cand == 0:
            return cand
    return t


def _pad_seq_len(t):
    """Pad T>128 up to a multiple of 128 so tiling never collapses to full-T."""
    if t <= 128 or t % 128 == 0:
        return t
    return ((t + 127) // 128) * 128


def _layernorm(v, w, b, eps=1e-5):
    # PyTorch nn.LayerNorm over last dim (biased variance), in f32.
    mean = jnp.mean(v, axis=-1, keepdims=True)
    var = jnp.mean((v - mean) ** 2, axis=-1, keepdims=True)
    return (v - mean) * lax.rsqrt(var + eps) * w + b


# --------------------------------------------------------------------------
# Kernel 1: ln1 + fused QKV projection -> head-major (B, H, T, D) outputs
# --------------------------------------------------------------------------
def qkv_kernel(x_ref, ln1w_ref, ln1b_ref, wqkv_ref, bqkv_ref,
               q_ref, k_ref, v_ref, *, n_head):
    x = x_ref[0]                                          # (TM, C) f32
    TM, C = x.shape
    H = n_head
    D = C // H
    h = _layernorm(x, ln1w_ref[...], ln1b_ref[...])       # f32
    qkv = jnp.dot(h.astype(jnp.bfloat16), wqkv_ref[...],
                  preferred_element_type=jnp.float32) + bqkv_ref[...]

    def heads(t):                                         # (TM, C) -> (H, TM, D)
        return t.reshape(TM, H, D).transpose(1, 0, 2)

    q_ref[0] = heads(qkv[:, 0 * C:1 * C]).astype(q_ref.dtype)
    k_ref[0] = heads(qkv[:, 1 * C:2 * C]).astype(k_ref.dtype)
    v_ref[0] = heads(qkv[:, 2 * C:3 * C]).astype(v_ref.dtype)


# --------------------------------------------------------------------------
# Kernel 2: flash-style causal attention (head-major inputs, online softmax)
# --------------------------------------------------------------------------
def attn_kernel(q_ref, k_ref, v_ref, y_ref, m_sc, l_sc, acc_sc):
    qi = pl.program_id(1)
    ki = pl.program_id(2)
    H, TQ, D = q_ref.shape[1], q_ref.shape[2], q_ref.shape[3]
    TK = k_ref.shape[2]

    @pl.when(ki == 0)
    def _():
        m_sc[...] = jnp.full_like(m_sc, -jnp.inf)
        l_sc[...] = jnp.zeros_like(l_sc)
        acc_sc[...] = jnp.zeros_like(acc_sc)

    q_first_row = qi * TQ
    q_last_row = qi * TQ + (TQ - 1)
    k_first_col = ki * TK
    k_last_col = ki * TK + (TK - 1)

    def update(apply_mask):
        q = q_ref[0]                                      # (H, TQ, D) bf16, pre-scaled
        k = k_ref[0]                                      # (H, TK, D) bf16
        v = v_ref[0]                                      # (H, TK, D) bf16
        s = jnp.einsum('hqd,hkd->hqk', q, k,
                       preferred_element_type=jnp.float32)
        # masked_fill(-inf) then clamp(+-1e4)  ==  clip then set masked to -1e4
        s = jnp.clip(s, -10000.0, 10000.0)
        if apply_mask:
            rows = q_first_row + lax.broadcasted_iota(jnp.int32, (TQ, TK), 0)
            cols = k_first_col + lax.broadcasted_iota(jnp.int32, (TQ, TK), 1)
            s = jnp.where((cols <= rows)[None, :, :], s, -10000.0)
        m_prev = m_sc[...]                                # (H, TQ, 1) f32
        m_new = jnp.maximum(m_prev, s.max(-1, keepdims=True))
        alpha = jnp.exp(m_prev - m_new)
        p = jnp.exp(s - m_new)                            # f32 softmax math
        l_sc[...] = alpha * l_sc[...] + p.sum(-1, keepdims=True)
        acc_sc[...] = alpha * acc_sc[...] + jnp.einsum(
            'hqk,hkd->hqd', p.astype(v.dtype), v,
            preferred_element_type=jnp.float32)
        m_sc[...] = m_new

    # Tile strictly below the diagonal: fully unmasked -> skip mask construction.
    @pl.when(k_last_col <= q_first_row)
    def _():
        update(apply_mask=False)

    # Tile straddling the diagonal: build the causal mask.
    @pl.when(jnp.logical_and(k_last_col > q_first_row, k_first_col <= q_last_row))
    def _():
        update(apply_mask=True)

    # (Tiles entirely in the future run neither branch; their K/V block index is
    #  clamped to the diagonal in the BlockSpec so no DMA is issued either.)

    @pl.when(ki == pl.num_programs(2) - 1)
    def _():
        out = acc_sc[...] * pl.reciprocal(l_sc[...], approx=True)   # (H, TQ, D) f32
        y_ref[0] = out.transpose(1, 0, 2).reshape(TQ, H * D).astype(y_ref.dtype)


# --------------------------------------------------------------------------
# Kernel 3: attention output projection + residual + ln2 + MLP + residual
# --------------------------------------------------------------------------
def proj_mlp_kernel(x_ref, y_ref, wp_ref, bp_ref, ln2w_ref, ln2b_ref,
                    w1_ref, b1_ref, w2_ref, b2_ref, o_ref):
    x = x_ref[0]                                            # (TM, C) f32
    attn_out = jnp.dot(y_ref[0], wp_ref[...],
                       preferred_element_type=jnp.float32) + bp_ref[...]
    x1 = x + attn_out                                       # residual 1, f32

    h2 = _layernorm(x1, ln2w_ref[...], ln2b_ref[...])
    m = jnp.dot(h2.astype(jnp.bfloat16), w1_ref[...],
                preferred_element_type=jnp.float32) + b1_ref[...]
    m = 0.5 * m * (1.0 + lax.erf(m * 0.7071067811865476))   # exact GELU (F.gelu)
    mlp_out = jnp.dot(m.astype(jnp.bfloat16), w2_ref[...],
                      preferred_element_type=jnp.float32) + b2_ref[...]
    o_ref[0] = (x1 + mlp_out).astype(o_ref.dtype)           # residual 2


# --------------------------------------------------------------------------
# Wrapper
# --------------------------------------------------------------------------
def block_forward(x, params, n_head):
    B, T, C = x.shape
    H = n_head
    assert C % H == 0
    D = C // H
    f32, bf16 = jnp.float32, jnp.bfloat16

    attn_pref, row_pref, vmem_limit = _chip_config()

    # Pad long non-multiple-of-128 sequences; causal mask hides padded keys.
    T_pad = _pad_seq_len(T)
    x_in = x if T_pad == T else jnp.pad(x, ((0, 0), (0, T_pad - T), (0, 0)))

    TM = _fit_tile(T_pad, row_pref)    # row tile for kernels 1 & 3
    TA = _fit_tile(T_pad, attn_pref)   # q == kv tile (equal, for the kv index clamp)

    # Fused QKV weight (C, 3C) / bias (1, 3C); the 1/sqrt(D) attention scale is
    # folded into the Q columns so the attention kernel does no per-score multiply.
    scale = 1.0 / math.sqrt(D)
    wqkv = jnp.concatenate(
        [params["wq"] * scale, params["wk"], params["wv"]], axis=1).astype(bf16)
    bqkv = jnp.concatenate(
        [params["bq"] * scale, params["bk"], params["bv"]], axis=1).astype(f32)
    wp, bp = params["wp"].astype(bf16), params["bp"].astype(f32)
    w1, b1 = params["w1"].astype(bf16), params["b1"].astype(f32)
    w2, b2 = params["w2"].astype(bf16), params["b2"].astype(f32)
    ln1w, ln1b = params["ln1w"].astype(f32), params["ln1b"].astype(f32)
    ln2w, ln2b = params["ln2w"].astype(f32), params["ln2b"].astype(f32)

    def cparams(sems):
        return pltpu.CompilerParams(dimension_semantics=sems,
                                    vmem_limit_bytes=vmem_limit)

    # ---- kernel 1: ln1 + fused QKV -> head-major q/k/v ---------------------
    q, k, v = pl.pallas_call(
        functools.partial(qkv_kernel, n_head=H),
        out_shape=(jax.ShapeDtypeStruct((B, H, T_pad, D), bf16),) * 3,
        grid=(B, T_pad // TM),
        in_specs=[
            pl.BlockSpec((1, TM, C), lambda b, i: (b, i, 0)),
            pl.BlockSpec((1, C), lambda b, i: (0, 0)),
            pl.BlockSpec((1, C), lambda b, i: (0, 0)),
            pl.BlockSpec((C, 3 * C), lambda b, i: (0, 0)),
            pl.BlockSpec((1, 3 * C), lambda b, i: (0, 0)),
        ],
        out_specs=[pl.BlockSpec((1, H, TM, D), lambda b, i: (b, 0, i, 0))] * 3,
        compiler_params=cparams(("parallel", "parallel")),
    )(x_in, ln1w, ln1b, wqkv, bqkv)

    # ---- kernel 2: flash causal attention ----------------------------------
    y = pl.pallas_call(
        attn_kernel,
        out_shape=jax.ShapeDtypeStruct((B, T_pad, C), bf16),
        grid_spec=pltpu.PrefetchScalarGridSpec(
            num_scalar_prefetch=0,
            grid=(B, T_pad // TA, T_pad // TA),
            in_specs=[
                pl.BlockSpec((1, H, TA, D), lambda b, qi, ki: (b, 0, qi, 0)),
                # Clamp kv block index to the diagonal: fully-masked future kv
                # tiles re-use the previous block and are never DMA'd.
                pl.BlockSpec((1, H, TA, D),
                             lambda b, qi, ki: (b, 0, jnp.minimum(ki, qi), 0)),
                pl.BlockSpec((1, H, TA, D),
                             lambda b, qi, ki: (b, 0, jnp.minimum(ki, qi), 0)),
            ],
            out_specs=pl.BlockSpec((1, TA, C), lambda b, qi, ki: (b, qi, 0)),
            scratch_shapes=[
                pltpu.VMEM((H, TA, 1), jnp.float32),   # running max
                pltpu.VMEM((H, TA, 1), jnp.float32),   # running sum
                pltpu.VMEM((H, TA, D), jnp.float32),   # accumulator
            ]),
        compiler_params=cparams(("parallel", "parallel", "arbitrary")),
    )(q, k, v)

    # ---- kernel 3: proj + residual + ln2 + MLP + residual ------------------
    # TODO(synk): for GPT-medium+ widths on v7x, single-buffer the constant weight
    # blocks (pipeline_mode=pl.Buffered(1)) and tile the 4C MLP hidden dim with an
    # extra 'arbitrary' grid axis; not needed at the tested sizes.
    out = pl.pallas_call(
        proj_mlp_kernel,
        out_shape=jax.ShapeDtypeStruct((B, T_pad, C), x.dtype),
        grid=(B, T_pad // TM),
        in_specs=[
            pl.BlockSpec((1, TM, C), lambda b, i: (b, i, 0)),   # x (residual)
            pl.BlockSpec((1, TM, C), lambda b, i: (b, i, 0)),   # y (attn heads)
            pl.BlockSpec((C, C), lambda b, i: (0, 0)),          # wp
            pl.BlockSpec((1, C), lambda b, i: (0, 0)),          # bp
            pl.BlockSpec((1, C), lambda b, i: (0, 0)),          # ln2w
            pl.BlockSpec((1, C), lambda b, i: (0, 0)),          # ln2b
            pl.BlockSpec((C, 4 * C), lambda b, i: (0, 0)),      # w1
            pl.BlockSpec((1, 4 * C), lambda b, i: (0, 0)),      # b1
            pl.BlockSpec((4 * C, C), lambda b, i: (0, 0)),      # w2
            pl.BlockSpec((1, C), lambda b, i: (0, 0)),          # b2
        ],
        out_specs=pl.BlockSpec((1, TM, C), lambda b, i: (b, i, 0)),
        compiler_params=cparams(("parallel", "parallel")),
    )(x_in, y, wp, bp, ln2w, ln2b, w1, b1, w2, b2)

    return out if T_pad == T else out[:, :T, :]


# --------------------------------------------------------------------------
# Pure-JAX reference (f32) mirroring the PyTorch Block forward (eval mode)
# --------------------------------------------------------------------------
def ref_block(x, p, n_head):
    def ln(v, w, b):
        mean = v.mean(-1, keepdims=True)
        var = ((v - mean) ** 2).mean(-1, keepdims=True)
        return (v - mean) / jnp.sqrt(var + 1e-5) * w + b

    B, T, C = x.shape
    D = C // n_head
    h = ln(x, p["ln1w"], p["ln1b"])
    q = (h @ p["wq"] + p["bq"]).reshape(B, T, n_head, D).transpose(0, 2, 1, 3)
    k = (h @ p["wk"] + p["bk"]).reshape(B, T, n_head, D).transpose(0, 2, 1, 3)
    v = (h @ p["wv"] + p["bv"]).reshape(B, T, n_head, D).transpose(0, 2, 1, 3)
    att = (q @ k.transpose(0, 1, 3, 2)) * (1.0 / math.sqrt(D))
    mask = jnp.tril(jnp.ones((T, T), jnp.float32))
    att = jnp.where(mask == 0, -jnp.inf, att)
    att = jnp.clip(att, -10000.0, 10000.0)
    att = jax.nn.softmax(att, axis=-1)
    y = (att @ v).transpose(0, 2, 1, 3).reshape(B, T, C)
    x1 = x + y @ p["wp"] + p["bp"]
    h2 = ln(x1, p["ln2w"], p["ln2b"])
    m = h2 @ p["w1"] + p["b1"]
    m = 0.5 * m * (1.0 + lax.erf(m / math.sqrt(2.0)))
    return x1 + m @ p["w2"] + p["b2"]


def init_params(key, C):
    ks = jax.random.split(key, 6)
    f32 = jnp.float32
    s = 0.02
    return {
        "ln1w": jnp.ones((1, C), f32), "ln1b": jnp.zeros((1, C), f32),
        "wq": s * jax.random.normal(ks[0], (C, C), f32), "bq": jnp.zeros((1, C), f32),
        "wk": s * jax.random.normal(ks[1], (C, C), f32), "bk": jnp.zeros((1, C), f32),
        "wv": s * jax.random.normal(ks[2], (C, C), f32), "bv": jnp.zeros((1, C), f32),
        "wp": s * jax.random.normal(ks[3], (C, C), f32), "bp": jnp.zeros((1, C), f32),
        "ln2w": jnp.ones((1, C), f32), "ln2b": jnp.zeros((1, C), f32),
        "w1": s * jax.random.normal(ks[4], (C, 4 * C), f32), "b1": jnp.zeros((1, 4 * C), f32),
        "w2": s * jax.random.normal(ks[5], (4 * C, C), f32), "b2": jnp.zeros((1, C), f32),
    }


if __name__ == "__main__":
    key = jax.random.PRNGKey(0)
    # (a) small full-dim blocks, (b) multi-tile / 256-tile flash path,
    # (c) non-multiple-of-128 T>128 -> exercises the padding fallback.
    for (B, T, C, H) in [(2, 8, 32, 4), (2, 256, 128, 4), (1, 160, 64, 2)]:
        kx, kp, key = jax.random.split(key, 3)
        x = jax.random.normal(kx, (B, T, C), jnp.float32)
        params = init_params(kp, C)

        out = jax.block_until_ready(block_forward(x, params, H))
        ref = ref_block(x, params, H)

        assert out.shape == (B, T, C)
        assert out.dtype == jnp.float32
        # bf16 matmul operands vs f32 reference => relaxed tolerance
        assert jnp.allclose(out, ref, atol=2e-2, rtol=2e-2), (
            f"mismatch at {(B, T, C, H)}: max abs err {jnp.max(jnp.abs(out - ref))}")

    # TODO(synk): optional `attention_mask` path (extra user mask + masked_layer_norm
    # helper) is not exercised by Block.forward's default call and is omitted.
    print("KERNEL_OK")
</pallas_src>

<mosaic_0001>
module attributes {stable_mosaic.version = 11 : i64} {
  func.func @qkv_kernel(%arg0: i32, %arg1: i32, %arg2: memref<1x8x32xf32, #tpu.memory_space<vmem>>, %arg3: memref<1x32xf32, #tpu.memory_space<vmem>>, %arg4: memref<1x32xf32, #tpu.memory_space<vmem>>, %arg5: memref<32x96xbf16, #tpu.memory_space<vmem>>, %arg6: memref<1x96xf32, #tpu.memory_space<vmem>>, %arg7: memref<1x4x8x8xbf16, #tpu.memory_space<vmem>>, %arg8: memref<1x4x8x8xbf16, #tpu.memory_space<vmem>>, %arg9: memref<1x4x8x8xbf16, #tpu.memory_space<vmem>>) attributes {dimension_semantics = [#tpu.dimension_semantics<parallel>, #tpu.dimension_semantics<parallel>], iteration_bounds = array<i64: 2, 1>, scalar_prefetch = 0 : i64, scratch_operands = 0 : i64, tpu.core_type = #tpu.core_type<tc>, window_params = [{transform_indices = @transform_0, window_bounds = array<i64: 1, 8, 32>}, {pipeline_mode = #tpu.pipeline_mode<synchronous>, transform_indices = @transform_1, window_bounds = array<i64: 1, 32>}, {pipeline_mode = #tpu.pipeline_mode<synchronous>, transform_indices = @transform_2, window_bounds = array<i64: 1, 32>}, {pipeline_mode = #tpu.pipeline_mode<synchronous>, transform_indices = @transform_3, window_bounds = array<i64: 32, 96>}, {pipeline_mode = #tpu.pipeline_mode<synchronous>, transform_indices = @transform_4, window_bounds = array<i64: 1, 96>}, {transform_indices = @transform_5, window_bounds = array<i64: 1, 4, 8, 8>}, {transform_indices = @transform_6, window_bounds = array<i64: 1, 4, 8, 8>}, {transform_indices = @transform_7, window_bounds = array<i64: 1, 4, 8, 8>}]} {
    %c0 = arith.constant 0 : index
    %c0_0 = arith.constant 0 : index
    %c0_1 = arith.constant 0 : index
    %0 = vector.load %arg2[%c0, %c0_0, %c0_1] : memref<1x8x32xf32, #tpu.memory_space<vmem>>, vector<1x8x32xf32>
    %1 = vector.shape_cast %0 : vector<1x8x32xf32> to vector<8x32xf32>
    %c0_2 = arith.constant 0 : index
    %c0_3 = arith.constant 0 : index
    %2 = vector.load %arg3[%c0_2, %c0_3] : memref<1x32xf32, #tpu.memory_space<vmem>>, vector<1x32xf32>
    %c0_4 = arith.constant 0 : index
    %c0_5 = arith.constant 0 : index
    %3 = vector.load %arg4[%c0_4, %c0_5] : memref<1x32xf32, #tpu.memory_space<vmem>>, vector<1x32xf32>
    %cst = arith.constant dense<0.000000e+00> : vector<8xf32>
    %4 = vector.multi_reduction <add>, %1, %cst [1] : vector<8x32xf32> to vector<8xf32>
    %5 = vector.shape_cast %4 : vector<8xf32> to vector<8x1xf32>
    %cst_6 = arith.constant 3.200000e+01 : f32
    %6 = vector.broadcast %cst_6 : f32 to vector<8x1xf32>
    %7 = arith.divf %5, %6 : vector<8x1xf32>
    %8 = vector.broadcast %7 : vector<8x1xf32> to vector<8x32xf32>
    %9 = arith.subf %1, %8 : vector<8x32xf32>
    %10 = arith.mulf %9, %9 : vector<8x32xf32>
    %cst_7 = arith.constant dense<0.000000e+00> : vector<8xf32>
    %11 = vector.multi_reduction <add>, %10, %cst_7 [1] : vector<8x32xf32> to vector<8xf32>
    %12 = vector.shape_cast %11 : vector<8xf32> to vector<8x1xf32>
    %cst_8 = arith.constant 3.200000e+01 : f32
    %13 = vector.broadcast %cst_8 : f32 to vector<8x1xf32>
    %14 = arith.divf %12, %13 : vector<8x1xf32>
    %15 = vector.broadcast %7 : vector<8x1xf32> to vector<8x32xf32>
    %16 = arith.subf %1, %15 : vector<8x32xf32>
    %cst_9 = arith.constant 9.99999974E-6 : f32
    %17 = vector.broadcast %cst_9 : f32 to vector<8x1xf32>
    %18 = arith.addf %14, %17 : vector<8x1xf32>
    %19 = math.rsqrt %18 : vector<8x1xf32>
    %20 = vector.broadcast %19 : vector<8x1xf32> to vector<8x32xf32>
    %21 = arith.mulf %16, %20 : vector<8x32xf32>
    %22 = vector.broadcast %2 : vector<1x32xf32> to vector<8x32xf32>
    %23 = arith.mulf %21, %22 : vector<8x32xf32>
    %24 = vector.broadcast %3 : vector<1x32xf32> to vector<8x32xf32>
    %25 = arith.addf %23, %24 : vector<8x32xf32>
    %26 = arith.truncf %25 : vector<8x32xf32> to vector<8x32xbf16>
    %c0_10 = arith.constant 0 : index
    %c0_11 = arith.constant 0 : index
    %27 = vector.load %arg5[%c0_10, %c0_11] : memref<32x96xbf16, #tpu.memory_space<vmem>>, vector<32x96xbf16>
    %cst_12 = arith.constant dense<0.000000e+00> : vector<8x96xf32>
    %28 = tpu.matmul %26, %27, %cst_12 {dimension_numbers = #tpu.dot_dimension_numbers<[1], [0], [0], [1], [0, 0, 1, 1], [], []>} : vector<8x32xbf16>, vector<32x96xbf16>, vector<8x96xf32> -> vector<8x96xf32>
    %c0_13 = arith.constant 0 : index
    %c0_14 = arith.constant 0 : index
    %29 = vector.load %arg6[%c0_13, %c0_14] : memref<1x96xf32, #tpu.memory_space<vmem>>, vector<1x96xf32>
    %30 = vector.broadcast %29 : vector<1x96xf32> to vector<8x96xf32>
    %31 = arith.addf %28, %30 : vector<8x96xf32>
    %32 = vector.extract_strided_slice %31 {offsets = [0, 0], sizes = [8, 32], strides = [1, 1]} : vector<8x96xf32> to vector<8x32xf32>
    %33 = vector.shape_cast %32 : vector<8x32xf32> to vector<8x4x8xf32>
    %34 = tpu.transpose %33, [1, 0, 2] : vector<8x4x8xf32> -> vector<4x8x8xf32>
    %35 = arith.truncf %34 : vector<4x8x8xf32> to vector<4x8x8xbf16>
    %c0_15 = arith.constant 0 : index
    %c0_16 = arith.constant 0 : index
    %c0_17 = arith.constant 0 : index
    %c0_18 = arith.constant 0 : index
    %36 = vector.load %arg7[%c0_15, %c0_16, %c0_17, %c0_18] : memref<1x4x8x8xbf16, #tpu.memory_space<vmem>>, vector<1x4x8x8xbf16>
    %37 = vector.shape_cast %36 : vector<1x4x8x8xbf16> to vector<4x8x8xbf16>
    %38 = vector.shape_cast %35 : vector<4x8x8xbf16> to vector<1x4x8x8xbf16>
    tpu.vector_store %arg7[%c0_15, %c0_16, %c0_17, %c0_18], %38 {strides = array<i32>} : memref<1x4x8x8xbf16, #tpu.memory_space<vmem>>, vector<1x4x8x8xbf16>,
    %39 = vector.extract_strided_slice %31 {offsets = [0, 32], sizes = [8, 32], strides = [1, 1]} : vector<8x96xf32> to vector<8x32xf32>
    %40 = vector.shape_cast %39 : vector<8x32xf32> to vector<8x4x8xf32>
    %41 = tpu.transpose %40, [1, 0, 2] : vector<8x4x8xf32> -> vector<4x8x8xf32>
    %42 = arith.truncf %41 : vector<4x8x8xf32> to vector<4x8x8xbf16>
    %c0_19 = arith.constant 0 : index
    %c0_20 = arith.constant 0 : index
    %c0_21 = arith.constant 0 : index
    %c0_22 = arith.constant 0 : index
    %43 = vector.load %arg8[%c0_19, %c0_20, %c0_21, %c0_22] : memref<1x4x8x8xbf16, #tpu.memory_space<vmem>>, vector<1x4x8x8xbf16>
    %44 = vector.shape_cast %43 : vector<1x4x8x8xbf16> to vector<4x8x8xbf16>
    %45 = vector.shape_cast %42 : vector<4x8x8xbf16> to vector<1x4x8x8xbf16>
    tpu.vector_store %arg8[%c0_19, %c0_20, %c0_21, %c0_22], %45 {strides = array<i32>} : memref<1x4x8x8xbf16, #tpu.memory_space<vmem>>, vector<1x4x8x8xbf16>,
    %46 = vector.extract_strided_slice %31 {offsets = [0, 64], sizes = [8, 32], strides = [1, 1]} : vector<8x96xf32> to vector<8x32xf32>
    %47 = vector.shape_cast %46 : vector<8x32xf32> to vector<8x4x8xf32>
    %48 = tpu.transpose %47, [1, 0, 2] : vector<8x4x8xf32> -> vector<4x8x8xf32>
    %49 = arith.truncf %48 : vector<4x8x8xf32> to vector<4x8x8xbf16>
    %c0_23 = arith.constant 0 : index
    %c0_24 = arith.constant 0 : index
    %c0_25 = arith.constant 0 : index
    %c0_26 = arith.constant 0 : index
    %50 = vector.load %arg9[%c0_23, %c0_24, %c0_25, %c0_26] : memref<1x4x8x8xbf16, #tpu.memory_space<vmem>>, vector<1x4x8x8xbf16>
    %51 = vector.shape_cast %50 : vector<1x4x8x8xbf16> to vector<4x8x8xbf16>
    %52 = vector.shape_cast %49 : vector<4x8x8xbf16> to vector<1x4x8x8xbf16>
    tpu.vector_store %arg9[%c0_23, %c0_24, %c0_25, %c0_26], %52 {strides = array<i32>} : memref<1x4x8x8xbf16, #tpu.memory_space<vmem>>, vector<1x4x8x8xbf16>,
    return
  }
  func.func @transform_0(%arg0: i32, %arg1: i32) -> (i32, i32, i32) {
    %c0_i32 = arith.constant 0 : i32
    %c0_i32_0 = arith.constant 0 : i32
    return %arg0, %arg1, %c0_i32 : i32, i32, i32
  }
  func.func @transform_1(%arg0: i32, %arg1: i32) -> (i32, i32) {
    %c0_i32 = arith.constant 0 : i32
    %c0_i32_0 = arith.constant 0 : i32
    %c0_i32_1 = arith.constant 0 : i32
    return %c0_i32, %c0_i32_0 : i32, i32
  }
  func.func @transform_2(%arg0: i32, %arg1: i32) -> (i32, i32) {
    %c0_i32 = arith.constant 0 : i32
    %c0_i32_0 = arith.constant 0 : i32
    %c0_i32_1 = arith.constant 0 : i32
    return %c0_i32, %c0_i32_0 : i32, i32
  }
  func.func @transform_3(%arg0: i32, %arg1: i32) -> (i32, i32) {
    %c0_i32 = arith.constant 0 : i32
    %c0_i32_0 = arith.constant 0 : i32
    %c0_i32_1 = arith.constant 0 : i32
    return %c0_i32, %c0_i32_0 : i32, i32
  }
  func.func @transform_4(%arg0: i32, %arg1: i32) -> (i32, i32) {
    %c0_i32 = arith.constant 0 : i32
    %c0_i32_0 = arith.constant 0 : i32
    %c0_i32_1 = arith.constant 0 : i32
    return %c0_i32, %c0_i32_0 : i32, i32
  }
  func.func @transform_5(%arg0: i32, %arg1: i32) -> (i32, i32, i32, i32) {
    %c0_i32 = arith.constant 0 : i32
    %c0_i32_0 = arith.constant 0 : i32
    %c0_i32_1 = arith.constant 0 : i32
    return %arg0, %c0_i32, %arg1, %c0_i32_0 : i32, i32, i32, i32
  }
  func.func @transform_6(%arg0: i32, %arg1: i32) -> (i32, i32, i32, i32) {
    %c0_i32 = arith.constant 0 : i32
    %c0_i32_0 = arith.constant 0 : i32
    %c0_i32_1 = arith.constant 0 : i32
    return %arg0, %c0_i32, %arg1, %c0_i32_0 : i32, i32, i32, i32
  }
  func.func @transform_7(%arg0: i32, %arg1: i32) -> (i32, i32, i32, i32) {
    %c0_i32 = arith.constant 0 : i32
    %c0_i32_0 = arith.constant 0 : i32
    %c0_i32_1 = arith.constant 0 : i32
    return %arg0, %c0_i32, %arg1, %c0_i32_0 : i32, i32, i32, i32
  }
}

</mosaic_0001>

<llo_original>
// kernel: tpu_custom_call.1
$region0: #{tpu_custom_call.1}
  #allocation0 [shape = 'u32[]', space=smem, size = 0x4, offset = 0x4, fixed_abs, tag = 'smem constant byte address 0x4 - core index']
  #allocation1 [shape = 'u32[72,128]{1,0:T(1,128)}', space=vmem, size = 0x9000, scoped, tag = 'internal scratch']
  %s0 = inlined_call_operand.hbm [shape: f32[2,8,32], index: 0, kind: input, shape index: {}]
  %s1 = inlined_call_operand.hbm [shape: f32[1,32], index: 1, kind: input, shape index: {}]
  %s2 = inlined_call_operand.vmem [shape: f32[1,32], index: 2, kind: input, shape index: {}]
  %s3 = inlined_call_operand.hbm [shape: bf16[32,96], index: 3, kind: input, shape index: {}]
  %s4 = inlined_call_operand.vmem [shape: f32[1,96], index: 4, kind: input, shape index: {}]
  %s5 = inlined_call_operand.hbm [shape: bf16[2,4,8,8], index: 5, kind: output, shape index: {0}]
  %s6 = inlined_call_operand.hbm [shape: bf16[2,4,8,8], index: 6, kind: output, shape index: {1}]
  %s7 = inlined_call_operand.hbm [shape: bf16[2,4,8,8], index: 7, kind: output, shape index: {2}]
  %8 = xla_tuple %s5, %s6, %s7
  %s9 = sld [smem:[#allocation0]]
  $region81: #{tpu_custom_call.1} parent=0
    _
  %s11 = ssub.s32 1, %s9
  %s12 = scalar_select 0, %s11, %s9
  $region1: #{tpu_custom_call.1} parent=0
    #allocation2 [shape = 'u8[8192]{0}', space=vmem, size = 0x2000, scoped, tag = 'input window, operand 0']
    #allocation3 [shape = 's32[2]{0}', space=sflag, size = 0x8, scoped, tag = 'scoped memory for tpu_custom_call.1']
    #allocation4 [shape = 's32[2]{0}', space=sflag, size = 0x8, scoped, tag = 'scoped memory for tpu_custom_call.1']
    #allocation5 [shape = 'u8[512]{0}', space=vmem, size = 0x400, scoped, tag = 'input window, operand 1, single buffered']
    #allocation6 [shape = 's32[1]{0}', space=sflag, size = 0x4, scoped, tag = 'scoped memory for tpu_custom_call.1']
    #allocation7 [shape = 'u8[8192]{0}', space=vmem, size = 0x2000, scoped, tag = 'input window, operand 3, single buffered']
    #allocation8 [shape = 'u8[16384]{0}', space=vmem, size = 0x4000, scoped, tag = 'output window, operand 0']
    #allocation9 [shape = 'u8[16384]{0}', space=vmem, size = 0x4000, scoped, tag = 'output window, operand 1']
    #allocation10 [shape = 's32[2]{0}', space=sflag, size = 0x8, scoped, tag = 'scoped memory for tpu_custom_call.1']
    #allocation11 [shape = 'u8[16384]{0}', space=vmem, size = 0x4000, scoped, tag = 'output window, operand 2']
    %13 = vsyncpa [#allocation3], 0
    %s14 = scalar_lea.sflag [#allocation3], 1
    %15 = vsyncpa %s14, 0
    %16 = vsyncpa [#allocation6], 0
    %17 = vsyncpa [#allocation4], 0
    %s18 = scalar_lea.sflag [#allocation4], 1
    %19 = vsyncpa %s18, 0
    %20 = vsyncpa [#allocation10], 0
    %s21 = scalar_lea.sflag [#allocation10], 1
    %22 = vsyncpa %s21, 0
    loop: start=0, step=1, limit=4
    $region2: #{tpu_custom_call.1} parent=1 // loop_pre_header
      _
    $region3: #{tpu_custom_call.1} parent=1 // loop_header
      %s24 = sphi 0, %s28
      %p25 = scmp.ge.s32.totalorder %s24, 4
      %s31 = sphi 0, %s43
      %s32 = sphi 0, %s39
      %s33 = sphi 0, %s31
      %s34 = sphi 0, %s32
      %s35 = sphi 0, %s33
      %s36 = sphi 0, %s34
      %s48 = sphi 0, %s50
      %s51 = sphi 0, %s48
      %s52 = sphi 0, %s51
      %s68 = sphi 0, %s52
      %s72 = sphi 0, %s72
      %s74 = sphi 0, %s72
      %s75 = sphi 0, %s74
      %s89 = sphi 0, %s75
      %s93 = sphi 0, %s93
      %s95 = sphi 0, %s93
      %s96 = sphi 0, %s95
      %s110 = sphi 0, %s96
      %s114 = sphi 0, %s114
      %s116 = sphi 0, %s114
      %s117 = sphi 0, %s116
      %s131 = sphi 0, %s117
      %s135 = sphi 0, %s135
      %s137 = sphi 0, %s135
      %s138 = sphi 0, %s137
      %s152 = sphi 0, %s138
      %s160 = sphi 0, %s162
      %s163 = sphi 0, %s160
      %s164 = sphi 0, %s163
      %s180 = sphi 0, %s164
      %s188 = sphi 0, %s190
      %s191 = sphi 0, %s188
      %s192 = sphi 0, %s191
      %s208 = sphi 0, %s192
      %s216 = sphi 0, %s218
      %s219 = sphi 0, %s216
      %s220 = sphi 0, %s219
      %s236 = sphi 0, %s220
    $region4: #{tpu_custom_call.1} parent=1 // loop_header_branch
      %27 = sbr.rel (%p25) target = $region8
    $region5: #{tpu_custom_call.1} parent=1 // loop_body
      %s29 = ssub.s32 %s24, 1
      %s30 = ssub.s32 %s24, 2
      %s37 = sadd.s32 1, %s32
      %p38 = scmp.ge.s32.totalorder %s37, 1
      %s39 = scalar_select %p38, 0, %s37
      %s40 = sadd.s32 1, %s31
      %s41 = scalar_select %p38, %s40, %s31
      %p42 = scmp.ge.s32.totalorder %s41, 2
      %s43 = scalar_select %p42, 0, %s41
      %s44 = ssub.s32 %s31, %s43
      %s45 = ssub.s32 %s32, %s39
      %s46 = sor.u32 %s44, %s45
      %p47 = scmp.eq.s32.totalorder %s46, 0
      %s49 = sadd.s32 %s48, 1
      %s50 = scalar_select %p47, %s48, %s49
      %p53 = pneg %p47
      %p54 = scmp.eq.s32.totalorder %s24, 1
      %p55 = por %p53, %p54
      %p56 = scmp.ne.s32.totalorder %s48, %s51
      %p57 = scmp.eq.s32.totalorder %s24, 0
      %p58 = por %p56, %p57
      %p59 = scmp.ne.s32.totalorder %s48, %s51
      %p60 = scmp.eq.s32.totalorder %s29, 1
      %p61 = por %p59, %p60
      %p62 = scmp.ne.s32.totalorder %s51, %s52
      %p63 = scmp.eq.s32.totalorder %s29, 0
      %p64 = por %p62, %p63
      %p65 = scmp.ne.s32.totalorder %s51, %s52
      %p66 = scmp.eq.s32.totalorder %s30, 1
      %p67 = por %p65, %p66
      %p69 = scmp.ne.s32.totalorder %s52, %s68
      %p70 = scmp.eq.s32.totalorder %s30, 0
      %p71 = por %p69, %p70
      %s73 = sadd.s32 %s72, 1
      %p76 = scmp.eq.s32.totalorder %s24, 1
      %p77 = scmp.ne.s32.totalorder %s72, %s74
      %p78 = scmp.eq.s32.totalorder %s24, 0
      %p79 = por %p77, %p78
      %p80 = scmp.ne.s32.totalorder %s72, %s74
      %p81 = scmp.eq.s32.totalorder %s29, 1
      %p82 = por %p80, %p81
      %p83 = scmp.ne.s32.totalorder %s74, %s75
      %p84 = scmp.eq.s32.totalorder %s29, 0
      %p85 = por %p83, %p84
      %p86 = scmp.ne.s32.totalorder %s74, %s75
      %p87 = scmp.eq.s32.totalorder %s30, 1
      %p88 = por %p86, %p87
      %p90 = scmp.ne.s32.totalorder %s75, %s89
      %p91 = scmp.eq.s32.totalorder %s30, 0
      %p92 = por %p90, %p91
      %s94 = sadd.s32 %s93, 1
      %p97 = scmp.eq.s32.totalorder %s24, 1
      %p98 = scmp.ne.s32.totalorder %s93, %s95
      %p99 = scmp.eq.s32.totalorder %s24, 0
      %p100 = por %p98, %p99
      %p101 = scmp.ne.s32.totalorder %s93, %s95
      %p102 = scmp.eq.s32.totalorder %s29, 1
      %p103 = por %p101, %p102
      %p104 = scmp.ne.s32.totalorder %s95, %s96
      %p105 = scmp.eq.s32.totalorder %s29, 0
      %p106 = por %p104, %p105
      %p107 = scmp.ne.s32.totalorder %s95, %s96
      %p108 = scmp.eq.s32.totalorder %s30, 1
      %p109 = por %p107, %p108
      %p111 = scmp.ne.s32.totalorder %s96, %s110
      %p112 = scmp.eq.s32.totalorder %s30, 0
      %p113 = por %p111, %p112
      %s115 = sadd.s32 %s114, 1
      %p118 = scmp.eq.s32.totalorder %s24, 1
      %p119 = scmp.ne.s32.totalorder %s114, %s116
      %p120 = scmp.eq.s32.totalorder %s24, 0
      %p121 = por %p119, %p120
      %p122 = scmp.ne.s32.totalorder %s114, %s116
      %p123 = scmp.eq.s32.totalorder %s29, 1
      %p124 = por %p122, %p123
      %p125 = scmp.ne.s32.totalorder %s116, %s117
      %p126 = scmp.eq.s32.totalorder %s29, 0
      %p127 = por %p125, %p126
      %p128 = scmp.ne.s32.totalorder %s116, %s117
      %p129 = scmp.eq.s32.totalorder %s30, 1
      %p130 = por %p128, %p129
      %p132 = scmp.ne.s32.totalorder %s117, %s131
      %p133 = scmp.eq.s32.totalorder %s30, 0
      %p134 = por %p132, %p133
      %s136 = sadd.s32 %s135, 1
      %p139 = scmp.eq.s32.totalorder %s24, 1
      %p140 = scmp.ne.s32.totalorder %s135, %s137
      %p141 = scmp.eq.s32.totalorder %s24, 0
      %p142 = por %p140, %p141
      %p143 = scmp.ne.s32.totalorder %s135, %s137
      %p144 = scmp.eq.s32.totalorder %s29, 1
      %p145 = por %p143, %p144
      %p146 = scmp.ne.s32.totalorder %s137, %s138
      %p147 = scmp.eq.s32.totalorder %s29, 0
      %p148 = por %p146, %p147
      %p149 = scmp.ne.s32.totalorder %s137, %s138
      %p150 = scmp.eq.s32.totalorder %s30, 1
      %p151 = por %p149, %p150
      %p153 = scmp.ne.s32.totalorder %s138, %s152
      %p154 = scmp.eq.s32.totalorder %s30, 0
      %p155 = por %p153, %p154
      %s156 = ssub.s32 %s31, %s43
      %s157 = ssub.s32 %s32, %s39
      %s158 = sor.u32 %s156, %s157
      %p159 = scmp.eq.s32.totalorder %s158, 0
      %s161 = sadd.s32 %s160, 1
      %s162 = scalar_select %p159, %s160, %s161
      %p165 = pneg %p159
      %p166 = scmp.eq.s32.totalorder %s24, 1
      %p167 = por %p165, %p166
      %p168 = scmp.ne.s32.totalorder %s160, %s163
      %p169 = scmp.eq.s32.totalorder %s24, 0
      %p170 = por %p168, %p169
      %p171 = scmp.ne.s32.totalorder %s160, %s163
      %p172 = scmp.eq.s32.totalorder %s29, 1
      %p173 = por %p171, %p172
      %p174 = scmp.ne.s32.totalorder %s163, %s164
      %p175 = scmp.eq.s32.totalorder %s29, 0
      %p176 = por %p174, %p175
      %p177 = scmp.ne.s32.totalorder %s163, %s164
      %p178 = scmp.eq.s32.totalorder %s30, 1
      %p179 = por %p177, %p178
      %p181 = scmp.ne.s32.totalorder %s164, %s180
      %p182 = scmp.eq.s32.totalorder %s30, 0
      %p183 = por %p181, %p182
      %s184 = ssub.s32 %s31, %s43
      %s185 = ssub.s32 %s32, %s39
      %s186 = sor.u32 %s184, %s185
      %p187 = scmp.eq.s32.totalorder %s186, 0
      %s189 = sadd.s32 %s188, 1
      %s190 = scalar_select %p187, %s188, %s189
      %p193 = pneg %p187
      %p194 = scmp.eq.s32.totalorder %s24, 1
      %p195 = por %p193, %p194
      %p196 = scmp.ne.s32.totalorder %s188, %s191
      %p197 = scmp.eq.s32.totalorder %s24, 0
      %p198 = por %p196, %p197
      %p199 = scmp.ne.s32.totalorder %s188, %s191
      %p200 = scmp.eq.s32.totalorder %s29, 1
      %p201 = por %p199, %p200
      %p202 = scmp.ne.s32.totalorder %s191, %s192
      %p203 = scmp.eq.s32.totalorder %s29, 0
      %p204 = por %p202, %p203
      %p205 = scmp.ne.s32.totalorder %s191, %s192
      %p206 = scmp.eq.s32.totalorder %s30, 1
      %p207 = por %p205, %p206
      %p209 = scmp.ne.s32.totalorder %s192, %s208
      %p210 = scmp.eq.s32.totalorder %s30, 0
      %p211 = por %p209, %p210
      %s212 = ssub.s32 %s31, %s43
      %s213 = ssub.s32 %s32, %s39
      %s214 = sor.u32 %s212, %s213
      %p215 = scmp.eq.s32.totalorder %s214, 0
      %s217 = sadd.s32 %s216, 1
      %s218 = scalar_select %p215, %s216, %s217
      %p221 = pneg %p215
      %p222 = scmp.eq.s32.totalorder %s24, 1
      %p223 = por %p221, %p222
      %p224 = scmp.ne.s32.totalorder %s216, %s219
      %p225 = scmp.eq.s32.totalorder %s24, 0
      %p226 = por %p224, %p225
      %p227 = scmp.ne.s32.totalorder %s216, %s219
      %p228 = scmp.eq.s32.totalorder %s29, 1
      %p229 = por %p227, %p228
      %p230 = scmp.ne.s32.totalorder %s219, %s220
      %p231 = scmp.eq.s32.totalorder %s29, 0
      %p232 = por %p230, %p231
      %p233 = scmp.ne.s32.totalorder %s219, %s220
      %p234 = scmp.eq.s32.totalorder %s30, 1
      %p235 = por %p233, %p234
      %p237 = scmp.ne.s32.totalorder %s220, %s236
      %p238 = scmp.eq.s32.totalorder %s30, 0
      %p239 = por %p237, %p238
      %p240 = scmp.le.s32.totalorder 1, %s24
      %p241 = scmp.lt.s32.totalorder %s24, 3
      %p242 = pnand %p240, %p241
      %p243 = pneg %p242
      // Predicated region
      $region9: #{tpu_custom_call.1} parent=5 // pred_check
        _
      $region10: #{tpu_custom_call.1} parent=5 // pred_check_branch
        %245 = sbr.rel (%p242) target = $region12
      $region11: #{tpu_custom_call.1} parent=5 // pred_region
        %s246 = ssub.s32 %s24, 1
        // Predicated region
        $region13: #{tpu_custom_call.1} parent=11 // pred_check
          %p247 = pneg %p85
        $region14: #{tpu_custom_call.1} parent=11 // pred_check_branch
          %249 = sbr.rel (%p247) target = $region16
        $region15: #{tpu_custom_call.1} parent=11 // pred_region
          %251 = vsyncadd [#allocation6], 0
          %s253 = sshll.u32 %s1, 4
          %s254 = int_to_ptr.hbm [resolvable:$true] %s253
          %s255 = sshll.u32 [#allocation5], 4
          %s256 = int_to_ptr.vmem [resolvable:$true] %s255
          %258 = dma.hbm_to_vmem [thread:$0]  %s254, 16, %s256, [#allocation6]
        $region16: #{tpu_custom_call.1} parent=11 // pred_fallthru
          _
        // Predicated region
        $region17: #{tpu_custom_call.1} parent=11 // pred_check
          %p259 = pneg %p106
        $region18: #{tpu_custom_call.1} parent=11 // pred_check_branch
          %261 = sbr.rel (%p259) target = $region20
        $region19: #{tpu_custom_call.1} parent=11 // pred_region
          _
        $region20: #{tpu_custom_call.1} parent=11 // pred_fallthru
          _
        // Predicated region
        $region21: #{tpu_custom_call.1} parent=11 // pred_check
          %p262 = pneg %p127
        $region22: #{tpu_custom_call.1} parent=11 // pred_check_branch
          %264 = sbr.rel (%p262) target = $region24
        $region23: #{tpu_custom_call.1} parent=11 // pred_region
          %266 = vsyncadd [#allocation6], 0
          %s267 = sshll.u32 %s3, 4
          %s268 = int_to_ptr.hbm [resolvable:$true] %s267
          %s269 = sshll.u32 [#allocation7], 4
          %s270 = int_to_ptr.vmem [resolvable:$true] %s269
          %275 = dma.hbm_to_vmem [thread:$0]  %s268, 256, %s270, [#allocation6], 64, 64, 4
        $region24: #{tpu_custom_call.1} parent=11 // pred_fallthru
          _
        // Predicated region
        $region25: #{tpu_custom_call.1} parent=11 // pred_check
          %p276 = pneg %p148
        $region26: #{tpu_custom_call.1} parent=11 // pred_check_branch
          %278 = sbr.rel (%p276) target = $region28
        $region27: #{tpu_custom_call.1} parent=11 // pred_region
          _
        $region28: #{tpu_custom_call.1} parent=11 // pred_fallthru
          _
      $region12: #{tpu_custom_call.1} parent=5 // pred_fallthru
        _
      %p279 = scmp.lt.s32.totalorder %s24, 2
      // Predicated region
      $region29: #{tpu_custom_call.1} parent=5 // pred_check
        %p280 = pneg %p279
      $region30: #{tpu_custom_call.1} parent=5 // pred_check_branch
        %282 = sbr.rel (%p280) target = $region32
      $region31: #{tpu_custom_call.1} parent=5 // pred_region
        // Predicated region
        $region33: #{tpu_custom_call.1} parent=31 // pred_check
          %p283 = pneg %p58
        $region34: #{tpu_custom_call.1} parent=31 // pred_check_branch
          %285 = sbr.rel (%p283) target = $region36
        $region35: #{tpu_custom_call.1} parent=31 // pred_region
          %s286 = sand.u32 %s48, 1
          %s287 = scalar_lea.sflag [#allocation3], %s286
          %s288 = sand.u32 %s48, 1
          %s289 = smul.addr %s288, 8
          %s290 = scalar_lea.vmem [#allocation2], %s289
          %292 = vsyncadd %s287, 0
          %s293 = sadd.s32 %s32, %s31
          %s294 = smul.addr %s293, 8
          %s295 = scalar_lea.hbm %s0, %s294
          %s297 = sshll.u32 %s295, 4
          %s298 = int_to_ptr.hbm [resolvable:$true] %s297
          %s299 = sshll.u32 %s290, 4
          %s300 = int_to_ptr.vmem [resolvable:$true] %s299
          %302 = dma.hbm_to_vmem [thread:$0]  %s298, 128, %s300, %s287
        $region36: #{tpu_custom_call.1} parent=31 // pred_fallthru
          _
      $region32: #{tpu_custom_call.1} parent=5 // pred_fallthru
        _
      %p303 = scmp.le.s32.totalorder 1, %s24
      %p304 = scmp.lt.s32.totalorder %s24, 3
      %p305 = pnand %p303, %p304
      %p306 = pneg %p305
      // Predicated region
      $region37: #{tpu_custom_call.1} parent=5 // pred_check
        _
      $region38: #{tpu_custom_call.1} parent=5 // pred_check_branch
        %308 = sbr.rel (%p305) target = $region40
      $region39: #{tpu_custom_call.1} parent=5 // pred_region
        %s309 = ssub.s32 %s24, 1
        %s310 = sand.u32 %s51, 1
        %s311 = scalar_lea.sflag [#allocation3], %s310
        %s312 = sand.u32 %s51, 1
        %s313 = smul.addr %s312, 8
        %s314 = scalar_lea.vmem [#allocation2], %s313
        // Predicated region
        $region41: #{tpu_custom_call.1} parent=39 // pred_check
          %p315 = pneg %p64
        $region42: #{tpu_custom_call.1} parent=39 // pred_check_branch
          %317 = sbr.rel (%p315) target = $region44
        $region43: #{tpu_custom_call.1} parent=39 // pred_region
          %319 = dma.done %s311, 128
        $region44: #{tpu_custom_call.1} parent=39 // pred_fallthru
          _
        // Predicated region
        $region45: #{tpu_custom_call.1} parent=39 // pred_check
          %p320 = pneg %p85
        $region46: #{tpu_custom_call.1} parent=39 // pred_check_branch
          %322 = sbr.rel (%p320) target = $region48
        $region47: #{tpu_custom_call.1} parent=39 // pred_region
          %324 = dma.done [#allocation6], 16
        $region48: #{tpu_custom_call.1} parent=39 // pred_fallthru
          _
        // Predicated region
        $region49: #{tpu_custom_call.1} parent=39 // pred_check
          %p325 = pneg %p127
        $region50: #{tpu_custom_call.1} parent=39 // pred_check_branch
          %327 = sbr.rel (%p325) target = $region52
        $region51: #{tpu_custom_call.1} parent=39 // pred_region
          %329 = dma.done [#allocation6], 256
        $region52: #{tpu_custom_call.1} parent=39 // pred_fallthru
          _
        %s330 = sand.u32 %s51, 1
        %s331 = scalar_lea.sflag [#allocation3], %s330
        %s332 = sand.u32 %s51, 1
        %s333 = smul.addr %s332, 8
        %s334 = scalar_lea.vmem [#allocation2], %s333
        %p335 = pneg %p64
        %p336 = pneg %p61
        %p337 = pneg %p85
        %p338 = pneg %p82
        %p339 = pneg %p106
        %p340 = pneg %p103
        %p341 = pneg %p127
        %p342 = pneg %p124
        %p343 = pneg %p148
        %p344 = pneg %p145
        %p345 = pneg %p176
        %p346 = pneg %p173
        %s347 = sand.u32 %s163, 1
        %s348 = scalar_lea.sflag [#allocation4], %s347
        %s349 = sand.u32 %s163, 1
        %s350 = smul.addr %s349, 16
        %s351 = scalar_lea.vmem [#allocation8], %s350
        %p352 = pneg %p204
        %p353 = pneg %p201
        %s354 = sand.u32 %s29, 1
        %s355 = scalar_lea.sflag [#allocation10], %s354
        %s356 = sand.u32 %s191, 1
        %s357 = smul.addr %s356, 16
        %s358 = scalar_lea.vmem [#allocation9], %s357
        %p359 = pneg %p232
        %p360 = pneg %p229
        %s361 = sand.u32 %s29, 1
        %s362 = scalar_lea.sflag [#allocation10], %s361
        %s363 = sand.u32 %s219, 1
        %s364 = smul.addr %s363, 16
        %s365 = scalar_lea.vmem [#allocation11], %s364
        %v367 = vld [vmem:[%s314] sm:$0xff]
        %v368 = vld [vmem:[#allocation5] sm:$0x1]
        %v369 = vld [vmem:[%s2] sm:$0x1]
        %vm370 = vcmask 261120
        %v371 = vsel %vm370, %v367, 0.0
        %372 = vadd.xlane.f32.xlu0 %v371
        %v373 = vpop.xlane.xlu0 %372
        %v374 = vrcp.pop 32.0
        %v375 = vmul.f32 32.0, %v374
        %v376 = vsub.f32 1.0, %v375
        %v377 = vmul.f32 %v374, %v376
        %v378 = vadd.f32 %v374, %v377
        %vm379 = vweird.f32 %v374
        %v380 = vsel %vm379, %v374, %v378
        %v381 = vmul.f32 %v373, %v380
        %v382 = vsub.f32 %v367, %v381
        %v383 = vmul.f32 %v382, %v382
        %v384 = vsel %vm370, %v383, 0.0
        %385 = vadd.xlane.f32.xlu0 %v384
        %v386 = vpop.xlane.xlu0 %385
        %v387 = vmul.f32 %v386, %v380
        %v388 = vadd.f32 %v387, 1e-05
        %v389 = vrsqrt.pop %v388
        %v390 = vmul.f32 %v389, %v388
        %v391 = vmul.f32 %v390, %v389
        %v392 = vmul.f32 0.5, %v391
        %v393 = vsub.f32 1.5, %v392
        %v394 = vmul.f32 %v389, %v393
        %vm395 = vweird.f32 %v388
        %vm396 = vweird.f32 %v389
        %vm397 = vmor %vm395, %vm396
        %v398 = vsel %vm397, %v389, %v394
        %v399 = vmul.f32 %v382, %v398
        %v401 = vperm.slane %v368, 0
        %v403 = vmul.f32 %v399, %v401
        %v405 = vperm.slane %v369, 0
        %v407 = vadd.f32 %v403, %v405
        %v408 = vpack.c.bf16 %v407, %v407
        %v409 = vld [vmem:[#allocation7] sm:$0xf]
        %v410 = vld [vmem:[#allocation7 + $0x4] sm:$0xf]
        %v411 = vld [vmem:[#allocation7 + $0x8] sm:$0xf]
        %v412 = vld [vmem:[#allocation7 + $0xc] sm:$0xf]
        %v413 = vld [vmem:[%s4] sm:$0x1]
        %v415 = vperm.slane %v413, 0
        %v421 = vunpack.c.l.b16 %v409
        %v422 = vunpack.c.l.b16 %v410
        %v423 = vunpack.c.l.b16 %v411
        %v424 = vunpack.c.l.b16 %v412
        %v425 = vpack.c.b16 %v422, %v421
        %v426 = vpack.c.b16 %v424, %v423
        %v430 = vsel %vm370, %v408, 0
        %432 = vmatpush.bf16.msra.mxu0 0
        %433 = vmatpush.bf16.msra.mxu0 0
        %434 = vmatpush.bf16.msra.mxu0 0
        %435 = vmatpush.bf16.msra.mxu0 0
        %436 = vmatpush.bf16.msra.mxu0 0
        %437 = vmatpush.bf16.msra.mxu0 0
        %438 = vmatpush.bf16.msra.mxu0 %v426
        %439 = vmatpush.bf16.msra.mxu0 %v425
        %440 = vmatmul.bf16.gmra.mxu0 %v430
        %v441 = vpop.f32.mrf.mxu0
        %v442 = vadd.f32 %v415, %v441
        %v443 = vpop.f32.mrf.mxu0
        %444 = vdwg.mxu0
        %446 = vrot.lane.b32.xlu0 %v442, 120
        %v447 = vpop.permute.xlu0 %446
        %449 = vrot.lane.b32.xlu0 %v442, 112
        %v450 = vpop.permute.xlu0 %449
        %452 = vrot.lane.b32.xlu0 %v442, 104
        %v453 = vpop.permute.xlu0 %452
        %v455 = vrot.slane %v450, 4
        %vm456 = vcmask 1047556
        %v457 = vsel %vm456, %v455, %v442
        %v458 = vrot.slane %v442, 4
        %v459 = vsel %vm456, %v450, %v458
        %v461 = vunpack.c.l.s4 1983009808
        %v462 = vunpack.c.0.s8 %v461
        %v463 = vperm.slane %v457, %v462
        %v465 = vunpack.c.l.s4 1983009808
        %v466 = vunpack.c.0.s8 %v465
        %v467 = vperm.slane %v459, %v466
        %v468 = vrot.slane %v453, 4
        %v469 = vsel %vm456, %v468, %v447
        %v470 = vrot.slane %v447, 4
        %v471 = vsel %vm456, %v453, %v470
        %v473 = vunpack.c.l.s4 1983009808
        %v474 = vunpack.c.0.s8 %v473
        %v475 = vperm.slane %v469, %v474
        %v477 = vunpack.c.l.s4 1983009808
        %v478 = vunpack.c.0.s8 %v477
        %v479 = vperm.slane %v471, %v478
        %v480 = vrot.slane %v475, 4
        %v481 = vsel %vm456, %v480, %v463
        %v482 = vrot.slane %v463, 4
        %v483 = vsel %vm456, %v475, %v482
        %v485 = vunpack.c.l.s4 1934713408
        %v486 = vunpack.c.0.s8 %v485
        %v487 = vperm.slane %v481, %v486
        %v489 = vunpack.c.l.s4 1934713408
        %v490 = vunpack.c.0.s8 %v489
        %v491 = vperm.slane %v483, %v490
        %v492 = vrot.slane %v479, 4
        %v493 = vsel %vm456, %v492, %v467
        %v494 = vrot.slane %v467, 4
        %v495 = vsel %vm456, %v479, %v494
        %v497 = vunpack.c.l.s4 1934713408
        %v498 = vunpack.c.0.s8 %v497
        %v499 = vperm.slane %v493, %v498
        %v501 = vunpack.c.l.s4 1934713408
        %v502 = vunpack.c.0.s8 %v501
        %v503 = vperm.slane %v495, %v502
        %v504 = vrot.slane %v487, 4
        %v505 = vsel %vm456, 0.0, %v504
        %v506 = vrot.slane %v491, 4
        %v507 = vsel %vm456, 0.0, %v506
        %v508 = vrot.slane %v499, 4
        %v509 = vsel %vm456, 0.0, %v508
        %v510 = vrot.slane %v503, 4
        %v511 = vsel %vm456, 0.0, %v510
        %v512 = vsel %vm456, %v506, %v487
        %v514 = vunpack.c.l.s4 1983009808
        %v515 = vunpack.c.0.s8 %v514
        %v516 = vperm.slane %v512, %v515
        %v517 = vrot.slane %v507, 4
        %v518 = vsel %vm456, %v517, %v505
        %v520 = vunpack.c.l.s4 1983009808
        %v521 = vunpack.c.0.s8 %v520
        %v522 = vperm.slane %v518, %v521
        %v523 = vsel %vm456, %v510, %v499
        %v525 = vunpack.c.l.s4 1983009808
        %v526 = vunpack.c.0.s8 %v525
        %v527 = vperm.slane %v523, %v526
        %v528 = vrot.slane %v511, 4
        %v529 = vsel %vm456, %v528, %v509
        %v531 = vunpack.c.l.s4 1983009808
        %v532 = vunpack.c.0.s8 %v531
        %v533 = vperm.slane %v529, %v532
        %v534 = vrot.slane %v522, 4
        %v535 = vsel %vm456, %v534, %v516
        %v536 = vrot.slane %v516, 4
        %v537 = vsel %vm456, %v522, %v536
        %v539 = vunpack.c.l.s4 1934713408
        %v540 = vunpack.c.0.s8 %v539
        %v541 = vperm.slane %v535, %v540
        %v543 = vunpack.c.l.s4 1934713408
        %v544 = vunpack.c.0.s8 %v543
        %v545 = vperm.slane %v537, %v544
        %v546 = vrot.slane %v533, 4
        %v547 = vsel %vm456, %v546, %v527
        %v548 = vrot.slane %v527, 4
        %v549 = vsel %vm456, %v533, %v548
        %v551 = vunpack.c.l.s4 1934713408
        %v552 = vunpack.c.0.s8 %v551
        %v553 = vperm.slane %v547, %v552
        %v555 = vunpack.c.l.s4 1934713408
        %v556 = vunpack.c.0.s8 %v555
        %v557 = vperm.slane %v549, %v556
        %v558 = vrot.slane %v553, 4
        %v559 = vsel %vm456, %v558, %v541
        %v560 = vrot.slane %v541, 4
        %v561 = vsel %vm456, %v553, %v560
        %v562 = vrot.slane %v557, 4
        %v563 = vsel %vm456, %v562, %v545
        %v564 = vrot.slane %v545, 4
        %v565 = vsel %vm456, %v557, %v564
        %v566 = vpack.c.bf16 %v559, %v559
        %v567 = vpack.c.bf16 %v561, %v561
        %v568 = vpack.c.bf16 %v563, %v563
        %v569 = vpack.c.bf16 %v565, %v565
        %vm570 = vcmask 60416
        %571 = vst.msk [vmem:[%s351] sm:$0xf] %vm570, %v566
        %572 = vst.msk [vmem:[%s351 + $0x4] sm:$0xf] %vm570, %v567
        %573 = vst.msk [vmem:[%s351 + $0x8] sm:$0xf] %vm570, %v568
        %574 = vst.msk [vmem:[%s351 + $0xc] sm:$0xf] %vm570, %v569
        %575 = vrot.lane.b32.xlu0 %v442, 96
        %v576 = vpop.permute.xlu0 %575
        %577 = vrot.lane.b32.xlu0 %v447, 96
        %v578 = vpop.permute.xlu0 %577
        %579 = vrot.lane.b32.xlu0 %v450, 96
        %v580 = vpop.permute.xlu0 %579
        %581 = vrot.lane.b32.xlu0 %v453, 96
        %v582 = vpop.permute.xlu0 %581
        %v587 = vrot.slane %v580, 4
        %v588 = vsel %vm456, %v587, %v576
        %v589 = vrot.slane %v576, 4
        %v590 = vsel %vm456, %v580, %v589
        %v592 = vunpack.c.l.s4 1983009808
        %v593 = vunpack.c.0.s8 %v592
        %v594 = vperm.slane %v588, %v593
        %v596 = vunpack.c.l.s4 1983009808
        %v597 = vunpack.c.0.s8 %v596
        %v598 = vperm.slane %v590, %v597
        %v599 = vrot.slane %v582, 4
        %v600 = vsel %vm456, %v599, %v578
        %v601 = vrot.slane %v578, 4
        %v602 = vsel %vm456, %v582, %v601
        %v604 = vunpack.c.l.s4 1983009808
        %v605 = vunpack.c.0.s8 %v604
        %v606 = vperm.slane %v600, %v605
        %v608 = vunpack.c.l.s4 1983009808
        %v609 = vunpack.c.0.s8 %v608
        %v610 = vperm.slane %v602, %v609
        %v611 = vrot.slane %v606, 4
        %v612 = vsel %vm456, %v611, %v594
        %v613 = vrot.slane %v594, 4
        %v614 = vsel %vm456, %v606, %v613
        %v616 = vunpack.c.l.s4 1934713408
        %v617 = vunpack.c.0.s8 %v616
        %v618 = vperm.slane %v612, %v617
        %v620 = vunpack.c.l.s4 1934713408
        %v621 = vunpack.c.0.s8 %v620
        %v622 = vperm.slane %v614, %v621
        %v623 = vrot.slane %v610, 4
        %v624 = vsel %vm456, %v623, %v598
        %v625 = vrot.slane %v598, 4
        %v626 = vsel %vm456, %v610, %v625
        %v628 = vunpack.c.l.s4 1934713408
        %v629 = vunpack.c.0.s8 %v628
        %v630 = vperm.slane %v624, %v629
        %v632 = vunpack.c.l.s4 1934713408
        %v633 = vunpack.c.0.s8 %v632
        %v634 = vperm.slane %v626, %v633
        %v635 = vrot.slane %v618, 4
        %v636 = vsel %vm456, 0.0, %v635
        %v637 = vrot.slane %v622, 4
        %v638 = vsel %vm456, 0.0, %v637
        %v639 = vrot.slane %v630, 4
        %v640 = vsel %vm456, 0.0, %v639
        %v641 = vrot.slane %v634, 4
        %v642 = vsel %vm456, 0.0, %v641
        %v643 = vsel %vm456, %v637, %v618
        %v645 = vunpack.c.l.s4 1983009808
        %v646 = vunpack.c.0.s8 %v645
        %v647 = vperm.slane %v643, %v646
        %v648 = vrot.slane %v638, 4
        %v649 = vsel %vm456, %v648, %v636
        %v651 = vunpack.c.l.s4 1983009808
        %v652 = vunpack.c.0.s8 %v651
        %v653 = vperm.slane %v649, %v652
        %v654 = vsel %vm456, %v641, %v630
        %v656 = vunpack.c.l.s4 1983009808
        %v657 = vunpack.c.0.s8 %v656
        %v658 = vperm.slane %v654, %v657
        %v659 = vrot.slane %v642, 4
        %v660 = vsel %vm456, %v659, %v640
        %v662 = vunpack.c.l.s4 1983009808
        %v663 = vunpack.c.0.s8 %v662
        %v664 = vperm.slane %v660, %v663
        %v665 = vrot.slane %v653, 4
        %v666 = vsel %vm456, %v665, %v647
        %v667 = vrot.slane %v647, 4
        %v668 = vsel %vm456, %v653, %v667
        %v670 = vunpack.c.l.s4 1934713408
        %v671 = vunpack.c.0.s8 %v670
        %v672 = vperm.slane %v666, %v671
        %v674 = vunpack.c.l.s4 1934713408
        %v675 = vunpack.c.0.s8 %v674
        %v676 = vperm.slane %v668, %v675
        %v677 = vrot.slane %v664, 4
        %v678 = vsel %vm456, %v677, %v658
        %v679 = vrot.slane %v658, 4
        %v680 = vsel %vm456, %v664, %v679
        %v682 = vunpack.c.l.s4 1934713408
        %v683 = vunpack.c.0.s8 %v682
        %v684 = vperm.slane %v678, %v683
        %v686 = vunpack.c.l.s4 1934713408
        %v687 = vunpack.c.0.s8 %v686
        %v688 = vperm.slane %v680, %v687
        %v689 = vrot.slane %v684, 4
        %v690 = vsel %vm456, %v689, %v672
        %v691 = vrot.slane %v672, 4
        %v692 = vsel %vm456, %v684, %v691
        %v693 = vrot.slane %v688, 4
        %v694 = vsel %vm456, %v693, %v676
        %v695 = vrot.slane %v676, 4
        %v696 = vsel %vm456, %v688, %v695
        %v697 = vpack.c.bf16 %v690, %v690
        %v698 = vpack.c.bf16 %v692, %v692
        %v699 = vpack.c.bf16 %v694, %v694
        %v700 = vpack.c.bf16 %v696, %v696
        %701 = vst.msk [vmem:[%s358] sm:$0xf] %vm570, %v697
        %702 = vst.msk [vmem:[%s358 + $0x4] sm:$0xf] %vm570, %v698
        %703 = vst.msk [vmem:[%s358 + $0x8] sm:$0xf] %vm570, %v699
        %704 = vst.msk [vmem:[%s358 + $0xc] sm:$0xf] %vm570, %v700
        %705 = vrot.lane.b32.xlu0 %v442, 64
        %v706 = vpop.permute.xlu0 %705
        %707 = vrot.lane.b32.xlu0 %v447, 64
        %v708 = vpop.permute.xlu0 %707
        %709 = vrot.lane.b32.xlu0 %v450, 64
        %v710 = vpop.permute.xlu0 %709
        %711 = vrot.lane.b32.xlu0 %v453, 64
        %v712 = vpop.permute.xlu0 %711
        %v717 = vrot.slane %v710, 4
        %v718 = vsel %vm456, %v717, %v706
        %v719 = vrot.slane %v706, 4
        %v720 = vsel %vm456, %v710, %v719
        %v722 = vunpack.c.l.s4 1983009808
        %v723 = vunpack.c.0.s8 %v722
        %v724 = vperm.slane %v718, %v723
        %v726 = vunpack.c.l.s4 1983009808
        %v727 = vunpack.c.0.s8 %v726
        %v728 = vperm.slane %v720, %v727
        %v729 = vrot.slane %v712, 4
        %v730 = vsel %vm456, %v729, %v708
        %v731 = vrot.slane %v708, 4
        %v732 = vsel %vm456, %v712, %v731
        %v734 = vunpack.c.l.s4 1983009808
        %v735 = vunpack.c.0.s8 %v734
        %v736 = vperm.slane %v730, %v735
        %v738 = vunpack.c.l.s4 1983009808
        %v739 = vunpack.c.0.s8 %v738
        %v740 = vperm.slane %v732, %v739
        %v741 = vrot.slane %v736, 4
        %v742 = vsel %vm456, %v741, %v724
        %v743 = vrot.slane %v724, 4
        %v744 = vsel %vm456, %v736, %v743
        %v746 = vunpack.c.l.s4 1934713408
        %v747 = vunpack.c.0.s8 %v746
        %v748 = vperm.slane %v742, %v747
        %v750 = vunpack.c.l.s4 1934713408
        %v751 = vunpack.c.0.s8 %v750
        %v752 = vperm.slane %v744, %v751
        %v753 = vrot.slane %v740, 4
        %v754 = vsel %vm456, %v753, %v728
        %v755 = vrot.slane %v728, 4
        %v756 = vsel %vm456, %v740, %v755
        %v758 = vunpack.c.l.s4 1934713408
        %v759 = vunpack.c.0.s8 %v758
        %v760 = vperm.slane %v754, %v759
        %v762 = vunpack.c.l.s4 1934713408
        %v763 = vunpack.c.0.s8 %v762
        %v764 = vperm.slane %v756, %v763
        %v765 = vrot.slane %v748, 4
        %v766 = vsel %vm456, 0.0, %v765
        %v767 = vrot.slane %v752, 4
        %v768 = vsel %vm456, 0.0, %v767
        %v769 = vrot.slane %v760, 4
        %v770 = vsel %vm456, 0.0, %v769
        %v771 = vrot.slane %v764, 4
        %v772 = vsel %vm456, 0.0, %v771
        %v773 = vsel %vm456, %v767, %v748
        %v775 = vunpack.c.l.s4 1983009808
        %v776 = vunpack.c.0.s8 %v775
        %v777 = vperm.slane %v773, %v776
        %v778 = vrot.slane %v768, 4
        %v779 = vsel %vm456, %v778, %v766
        %v781 = vunpack.c.l.s4 1983009808
        %v782 = vunpack.c.0.s8 %v781
        %v783 = vperm.slane %v779, %v782
        %v784 = vsel %vm456, %v771, %v760
        %v786 = vunpack.c.l.s4 1983009808
        %v787 = vunpack.c.0.s8 %v786
        %v788 = vperm.slane %v784, %v787
        %v789 = vrot.slane %v772, 4
        %v790 = vsel %vm456, %v789, %v770
        %v792 = vunpack.c.l.s4 1983009808
        %v793 = vunpack.c.0.s8 %v792
        %v794 = vperm.slane %v790, %v793
        %v795 = vrot.slane %v783, 4
        %v796 = vsel %vm456, %v795, %v777
        %v797 = vrot.slane %v777, 4
        %v798 = vsel %vm456, %v783, %v797
        %v800 = vunpack.c.l.s4 1934713408
        %v801 = vunpack.c.0.s8 %v800
        %v802 = vperm.slane %v796, %v801
        %v804 = vunpack.c.l.s4 1934713408
        %v805 = vunpack.c.0.s8 %v804
        %v806 = vperm.slane %v798, %v805
        %v807 = vrot.slane %v794, 4
        %v808 = vsel %vm456, %v807, %v788
        %v809 = vrot.slane %v788, 4
        %v810 = vsel %vm456, %v794, %v809
        %v812 = vunpack.c.l.s4 1934713408
        %v813 = vunpack.c.0.s8 %v812
        %v814 = vperm.slane %v808, %v813
        %v816 = vunpack.c.l.s4 1934713408
        %v817 = vunpack.c.0.s8 %v816
        %v818 = vperm.slane %v810, %v817
        %v819 = vrot.slane %v814, 4
        %v820 = vsel %vm456, %v819, %v802
        %v821 = vrot.slane %v802, 4
        %v822 = vsel %vm456, %v814, %v821
        %v823 = vrot.slane %v818, 4
        %v824 = vsel %vm456, %v823, %v806
        %v825 = vrot.slane %v806, 4
        %v826 = vsel %vm456, %v818, %v825
        %v827 = vpack.c.bf16 %v820, %v820
        %v828 = vpack.c.bf16 %v822, %v822
        %v829 = vpack.c.bf16 %v824, %v824
        %v830 = vpack.c.bf16 %v826, %v826
        %831 = vst.msk [vmem:[%s365] sm:$0xf] %vm570, %v827
        %832 = vst.msk [vmem:[%s365 + $0x4] sm:$0xf] %vm570, %v828
        %833 = vst.msk [vmem:[%s365 + $0x8] sm:$0xf] %vm570, %v829
        %834 = vst.msk [vmem:[%s365 + $0xc] sm:$0xf] %vm570, %v830
        %s835 = sand.u32 %s163, 1
        %s836 = scalar_lea.sflag [#allocation4], %s835
        %s837 = sand.u32 %s163, 1
        %s838 = smul.addr %s837, 16
        %s839 = scalar_lea.vmem [#allocation8], %s838
        %s840 = sand.u32 %s29, 1
        %s841 = scalar_lea.sflag [#allocation10], %s840
        %s842 = sand.u32 %s191, 1
        %s843 = smul.addr %s842, 16
        %s844 = scalar_lea.vmem [#allocation9], %s843
        %s845 = sand.u32 %s29, 1
        %s846 = scalar_lea.sflag [#allocation10], %s845
        %s847 = sand.u32 %s219, 1
        %s848 = smul.addr %s847, 16
        %s849 = scalar_lea.vmem [#allocation11], %s848
        // Predicated region
        $region53: #{tpu_custom_call.1} parent=39 // pred_check
          %p850 = pneg %p173
        $region54: #{tpu_custom_call.1} parent=39 // pred_check_branch
          %852 = sbr.rel (%p850) target = $region56
        $region55: #{tpu_custom_call.1} parent=39 // pred_region
          %854 = vsyncadd %s836, 0
          %s855 = smul.addr %s33, 4
          %s856 = sadd.s32 %s34, %s855
          %s857 = smul.addr %s856, 4
          %s858 = scalar_lea.hbm %s5, %s857
          %s859 = sshll.u32 %s839, 4
          %s860 = int_to_ptr.vmem [resolvable:$true] %s859
          %s861 = sshll.u32 %s858, 4
          %s862 = int_to_ptr.hbm [resolvable:$true] %s861
          %867 = dma.vmem_to_hbm [thread:$0]  %s860, 256, %s862, %s836, 64, 64, 4
        $region56: #{tpu_custom_call.1} parent=39 // pred_fallthru
          _
        // Predicated region
        $region57: #{tpu_custom_call.1} parent=39 // pred_check
          %p868 = pneg %p201
        $region58: #{tpu_custom_call.1} parent=39 // pred_check_branch
          %870 = sbr.rel (%p868) target = $region60
        $region59: #{tpu_custom_call.1} parent=39 // pred_region
          %872 = vsyncadd %s841, 0
          %s873 = smul.addr %s33, 4
          %s874 = sadd.s32 %s34, %s873
          %s875 = smul.addr %s874, 4
          %s876 = scalar_lea.hbm %s6, %s875
          %s877 = sshll.u32 %s844, 4
          %s878 = int_to_ptr.vmem [resolvable:$true] %s877
          %s879 = sshll.u32 %s876, 4
          %s880 = int_to_ptr.hbm [resolvable:$true] %s879
          %885 = dma.vmem_to_hbm [thread:$0]  %s878, 256, %s880, %s841, 64, 64, 4
        $region60: #{tpu_custom_call.1} parent=39 // pred_fallthru
          _
        // Predicated region
        $region61: #{tpu_custom_call.1} parent=39 // pred_check
          %p886 = pneg %p229
        $region62: #{tpu_custom_call.1} parent=39 // pred_check_branch
          %888 = sbr.rel (%p886) target = $region64
        $region63: #{tpu_custom_call.1} parent=39 // pred_region
          %890 = vsyncadd %s846, 0
          %s891 = smul.addr %s33, 4
          %s892 = sadd.s32 %s34, %s891
          %s893 = smul.addr %s892, 4
          %s894 = scalar_lea.hbm %s7, %s893
          %s895 = sshll.u32 %s849, 4
          %s896 = int_to_ptr.vmem [resolvable:$true] %s895
          %s897 = sshll.u32 %s894, 4
          %s898 = int_to_ptr.hbm [resolvable:$true] %s897
          %903 = dma.vmem_to_hbm [thread:$0]  %s896, 256, %s898, %s846, 64, 64, 4
        $region64: #{tpu_custom_call.1} parent=39 // pred_fallthru
          _
      $region40: #{tpu_custom_call.1} parent=5 // pred_fallthru
        _
      %p904 = scmp.le.s32.totalorder 2, %s24
      // Predicated region
      $region65: #{tpu_custom_call.1} parent=5 // pred_check
        %p905 = pneg %p904
      $region66: #{tpu_custom_call.1} parent=5 // pred_check_branch
        %907 = sbr.rel (%p905) target = $region68
      $region67: #{tpu_custom_call.1} parent=5 // pred_region
        %s908 = ssub.s32 %s24, 2
        // Predicated region
        $region69: #{tpu_custom_call.1} parent=67 // pred_check
          %p909 = pneg %p179
        $region70: #{tpu_custom_call.1} parent=67 // pred_check_branch
          %911 = sbr.rel (%p909) target = $region72
        $region71: #{tpu_custom_call.1} parent=67 // pred_region
          %s912 = sand.u32 %s164, 1
          %s913 = scalar_lea.sflag [#allocation4], %s912
          %s914 = sand.u32 %s164, 1
          %s915 = smul.addr %s914, 16
          %s916 = scalar_lea.vmem [#allocation8], %s915
          %918 = dma.done %s913, 256
        $region72: #{tpu_custom_call.1} parent=67 // pred_fallthru
          _
        // Predicated region
        $region73: #{tpu_custom_call.1} parent=67 // pred_check
          %p919 = pneg %p207
        $region74: #{tpu_custom_call.1} parent=67 // pred_check_branch
          %921 = sbr.rel (%p919) target = $region76
        $region75: #{tpu_custom_call.1} parent=67 // pred_region
          %s922 = sand.u32 %s30, 1
          %s923 = scalar_lea.sflag [#allocation10], %s922
          %s924 = sand.u32 %s192, 1
          %s925 = smul.addr %s924, 16
          %s926 = scalar_lea.vmem [#allocation9], %s925
          %928 = dma.done %s923, 256
        $region76: #{tpu_custom_call.1} parent=67 // pred_fallthru
          _
        // Predicated region
        $region77: #{tpu_custom_call.1} parent=67 // pred_check
          %p929 = pneg %p235
        $region78: #{tpu_custom_call.1} parent=67 // pred_check_branch
          %931 = sbr.rel (%p929) target = $region80
        $region79: #{tpu_custom_call.1} parent=67 // pred_region
          %s932 = sand.u32 %s30, 1
          %s933 = scalar_lea.sflag [#allocation10], %s932
          %s934 = sand.u32 %s220, 1
          %s935 = smul.addr %s934, 16
          %s936 = scalar_lea.vmem [#allocation11], %s935
          %938 = dma.done %s933, 256
        $region80: #{tpu_custom_call.1} parent=67 // pred_fallthru
          _
      $region68: #{tpu_custom_call.1} parent=5 // pred_fallthru
        _
    $region6: #{tpu_custom_call.1} parent=1 // loop_footer
      %s28 = sadd.s32 1, %s24
    $region7: #{tpu_custom_call.1} parent=1 // loop_footer_branch
      %23 = sbr.rel target = $region3
    $region8: #{tpu_custom_call.1} parent=1 // loop_exit
      _
    %939 = vsyncpa [#allocation3], 1
    %s940 = scalar_lea.sflag [#allocation3], 1
    %941 = vsyncpa %s940, 1
    %942 = vsyncpa [#allocation6], 1
    %943 = vsyncpa [#allocation4], 1
    %s944 = scalar_lea.sflag [#allocation4], 1
    %945 = vsyncpa %s944, 1
    %946 = vsyncpa [#allocation10], 1
    %s947 = scalar_lea.sflag [#allocation10], 1
    %948 = vsyncpa %s947, 1

</llo_original>
